<compile_context>
chip_gen: v5e
topology: v5e:2x2
jax: 0.10.0
libtpu: 0.0.40
codegen_flags: <defaults>
</compile_context>

<pallas_src>
import jax
import jax.numpy as jnp
from jax.experimental import pallas as pl
from jax.experimental.pallas import tpu as pltpu


def linear_kernel(x_ref, w_ref, b_ref, o_ref):
    # x_ref: (B, 3) f32 in VMEM; w_ref: (3,) f32 in SMEM; b_ref: (1,) f32 in SMEM.
    x = x_ref[...]                                  # one small VMEM tile
    kin = x.shape[1]                                # static (= 3)
    acc = x[:, 0:1] * w_ref[0] + b_ref[0]           # VPU FMA, scalar broadcast
    for k in range(1, kin):                         # statically unrolled (K=3)
        acc = acc + x[:, k:k + 1] * w_ref[k]
    o_ref[...] = acc                                # (B, 1) f32


def linear_forward(x, w, b):
    """y = x @ w[:, None] + b  ==  torch.nn.Linear(3, 1)(x).

    x: (B, 3) f32, w: (3,) f32 (flattened nn.Linear weight), b: (1,) f32.
    """
    B, Kin = x.shape
    return pl.pallas_call(
        linear_kernel,
        out_shape=jax.ShapeDtypeStruct((B, 1), x.dtype),
        in_specs=[
            # Whole (B, 3) array as a single VMEM block — one grid point.
            pl.BlockSpec((B, Kin), lambda: (0, 0)),
            # Parameters as scalars in SMEM: no padded VMEM tiles, no DMAs.
            pl.BlockSpec(memory_space=pltpu.MemorySpace.SMEM),
            pl.BlockSpec(memory_space=pltpu.MemorySpace.SMEM),
        ],
        out_specs=pl.BlockSpec((B, 1), lambda: (0, 0)),
    )(x, w, b)


if __name__ == "__main__":
    key = jax.random.PRNGKey(0)
    kx, kw, kb = jax.random.split(key, 3)

    B, IN, OUT = 8, 3, 1

    # Deterministic parameter init mimicking nn.Linear default (uniform ±1/sqrt(in)).
    bound = 1.0 / jnp.sqrt(jnp.float32(IN))
    weight = jax.random.uniform(kw, (OUT, IN), jnp.float32, -bound, bound)  # torch layout (out, in)
    bias = jax.random.uniform(kb, (OUT,), jnp.float32, -bound, bound)       # (1,)

    x = jax.random.normal(kx, (B, IN), jnp.float32)

    w_flat = weight.reshape(IN)     # (3,) scalars for SMEM
    b_flat = bias                   # (1,) scalar for SMEM

    y = linear_forward(x, w_flat, b_flat)
    jax.block_until_ready(y)

    # Sanity check against plain JAX reference (same math as the PyTorch module).
    y_ref = x @ weight.T + bias
    assert y.shape == (B, OUT)
    assert jnp.allclose(y, y_ref, atol=1e-5, rtol=1e-5)

    print("KERNEL_OK")
</pallas_src>

<mosaic_0001>
module attributes {stable_mosaic.version = 11 : i64} {
  func.func @linear_kernel(%arg0: memref<8x3xf32, #tpu.memory_space<vmem>>, %arg1: memref<3xf32, #tpu.memory_space<smem>>, %arg2: memref<1xf32, #tpu.memory_space<smem>>, %arg3: memref<8x1xf32, #tpu.memory_space<vmem>>) attributes {dimension_semantics = [], scalar_prefetch = 0 : i64, scratch_operands = 0 : i64, tpu.core_type = #tpu.core_type<tc>} {
    %c0 = arith.constant 0 : index
    %c0_0 = arith.constant 0 : index
    %0 = vector.load %arg0[%c0, %c0_0] : memref<8x3xf32, #tpu.memory_space<vmem>>, vector<8x3xf32>
    %1 = vector.extract_strided_slice %0 {offsets = [0, 0], sizes = [8, 1], strides = [1, 1]} : vector<8x3xf32> to vector<8x1xf32>
    %c0_1 = arith.constant 0 : index
    %2 = memref.load %arg1[%c0_1] : memref<3xf32, #tpu.memory_space<smem>>
    %3 = vector.broadcast %2 : f32 to vector<8x1xf32>
    %4 = arith.mulf %1, %3 : vector<8x1xf32>
    %c0_2 = arith.constant 0 : index
    %5 = memref.load %arg2[%c0_2] : memref<1xf32, #tpu.memory_space<smem>>
    %6 = vector.broadcast %5 : f32 to vector<8x1xf32>
    %7 = arith.addf %4, %6 : vector<8x1xf32>
    %8 = vector.extract_strided_slice %0 {offsets = [0, 1], sizes = [8, 1], strides = [1, 1]} : vector<8x3xf32> to vector<8x1xf32>
    %c1 = arith.constant 1 : index
    %9 = memref.load %arg1[%c1] : memref<3xf32, #tpu.memory_space<smem>>
    %10 = vector.broadcast %9 : f32 to vector<8x1xf32>
    %11 = arith.mulf %8, %10 : vector<8x1xf32>
    %12 = arith.addf %7, %11 : vector<8x1xf32>
    %13 = vector.extract_strided_slice %0 {offsets = [0, 2], sizes = [8, 1], strides = [1, 1]} : vector<8x3xf32> to vector<8x1xf32>
    %c2 = arith.constant 2 : index
    %14 = memref.load %arg1[%c2] : memref<3xf32, #tpu.memory_space<smem>>
    %15 = vector.broadcast %14 : f32 to vector<8x1xf32>
    %16 = arith.mulf %13, %15 : vector<8x1xf32>
    %17 = arith.addf %12, %16 : vector<8x1xf32>
    %c0_3 = arith.constant 0 : index
    %c0_4 = arith.constant 0 : index
    %18 = vector.load %arg3[%c0_3, %c0_4] : memref<8x1xf32, #tpu.memory_space<vmem>>, vector<8x1xf32>
    tpu.vector_store %arg3[%c0_3, %c0_4], %17 {strides = array<i32>} : memref<8x1xf32, #tpu.memory_space<vmem>>, vector<8x1xf32>,
    return
  }
}

</mosaic_0001>

<llo_original>
// kernel: tpu_custom_call.1
$region0: #{tpu_custom_call.1}
  #allocation0 [shape = 'u32[]', space=smem, size = 0x4, offset = 0x4, fixed_abs, tag = 'smem constant byte address 0x4 - core index']
  #allocation1 [shape = 'u32[72,128]{1,0:T(1,128)}', space=vmem, size = 0x9000, scoped, tag = 'internal scratch']
  #allocation2 [shape = 'f32[1]{0:T(128)S(6)}', space=smem, size = 0x200, scoped, tag = 'scoped memory for tpu_custom_call.1']
  %s0 = inlined_call_operand.vmem [shape: f32[8,3], index: 0, kind: input, shape index: {}]
  %s1 = inlined_call_operand.vmem [shape: f32[3], index: 1, kind: input, shape index: {}]
  %s2 = inlined_call_operand.<no memory space> [shape: f32[1], index: 2, kind: input, shape index: {}]
  %s3 = inlined_call_operand.vmem [shape: f32[8,1], index: 3, kind: output, shape index: {}]
  %s4 = sld [smem:[#allocation0]]
  $region26: #{tpu_custom_call.1} parent=0
    _
  %s6 = ssub.s32 1, %s4
  %s7 = scalar_select 0, %s6, %s4
  %8 = sst [smem:[#allocation2]] %s2
  $region1: #{tpu_custom_call.1} parent=0
    #allocation3 [shape = 'u8[512]{0}', space=smem, size = 0x200, scoped, tag = 'input window, operand 1, single buffered']
    #allocation4 [shape = 's32[1]{0}', space=sflag, size = 0x4, scoped, tag = 'scoped memory for tpu_custom_call.1']
    %9 = vsyncpa [#allocation4], 0
    // Predicated region
    $region2: #{tpu_custom_call.1} parent=1 // pred_check
      _
    $region3: #{tpu_custom_call.1} parent=1 // pred_check_branch
      %11 = sbr.rel (0) target = $region5
    $region4: #{tpu_custom_call.1} parent=1 // pred_region
      _
    $region5: #{tpu_custom_call.1} parent=1 // pred_fallthru
      _
    // Predicated region
    $region6: #{tpu_custom_call.1} parent=1 // pred_check
      _
    $region7: #{tpu_custom_call.1} parent=1 // pred_check_branch
      %13 = sbr.rel (0) target = $region9
    $region8: #{tpu_custom_call.1} parent=1 // pred_region
      %15 = vsyncadd [#allocation4], 0
      %s17 = sshll.u32 %s1, 4
      %s18 = int_to_ptr.vmem [resolvable:$true] %s17
      %20 = dma.vmem_to_smem %s18, 16, [#allocation3], [#allocation4]
    $region9: #{tpu_custom_call.1} parent=1 // pred_fallthru
      _
    // Predicated region
    $region10: #{tpu_custom_call.1} parent=1 // pred_check
      _
    $region11: #{tpu_custom_call.1} parent=1 // pred_check_branch
      %22 = sbr.rel (0) target = $region13
    $region12: #{tpu_custom_call.1} parent=1 // pred_region
      _
    $region13: #{tpu_custom_call.1} parent=1 // pred_fallthru
      _
    // Predicated region
    $region14: #{tpu_custom_call.1} parent=1 // pred_check
      _
    $region15: #{tpu_custom_call.1} parent=1 // pred_check_branch
      %24 = sbr.rel (0) target = $region17
    $region16: #{tpu_custom_call.1} parent=1 // pred_region
      %26 = dma.done [#allocation4], 16
    $region17: #{tpu_custom_call.1} parent=1 // pred_fallthru
      _
    %27 = sfence
    %v28 = vld [vmem:[%s0] sm:$0xff]
    %s29 = sld [smem:[#allocation3]]
    %v30 = vstv %s29
    %v31 = vmul.f32 %v28, %v30
    %s32 = sld [smem:[#allocation2]]
    %v33 = vstv %s32
    %v34 = vadd.f32 %v31, %v33
    %s35 = sld [smem:[#allocation3 + $0x1]]
    %v36 = vstv %s35
    %v37 = vmul.f32 %v28, %v36
    %39 = vrot.lane.b32.xlu0 %v37, 127
    %v40 = vpop.permute.xlu0 %39
    %v42 = vadd.f32 %v34, %v40
    %s43 = sld [smem:[#allocation3 + $0x2]]
    %v44 = vstv %s43
    %v45 = vmul.f32 %v28, %v44
    %47 = vrot.lane.b32.xlu0 %v45, 126
    %v48 = vpop.permute.xlu0 %47
    %v50 = vadd.f32 %v42, %v48
    %vm51 = vcmask 7168
    %52 = vst.msk [vmem:[%s3] sm:$0xff] %vm51, %v50
    // Predicated region
    $region18: #{tpu_custom_call.1} parent=1 // pred_check
      _
    $region19: #{tpu_custom_call.1} parent=1 // pred_check_branch
      %54 = sbr.rel (0) target = $region21
    $region20: #{tpu_custom_call.1} parent=1 // pred_region
      _
    $region21: #{tpu_custom_call.1} parent=1 // pred_fallthru
      _
    // Predicated region
    $region22: #{tpu_custom_call.1} parent=1 // pred_check
      _
    $region23: #{tpu_custom_call.1} parent=1 // pred_check_branch
      %56 = sbr.rel (0) target = $region25
    $region24: #{tpu_custom_call.1} parent=1 // pred_region
      _
    $region25: #{tpu_custom_call.1} parent=1 // pred_fallthru
      _
    %57 = vsyncpa [#allocation4], 1

</llo_original>
